<compile_context>
chip_gen: v5e
topology: v5e:2x2
jax: 0.10.0
libtpu: 0.0.40
codegen_flags: <defaults>
</compile_context>

<pallas_src>
import functools

import jax
import jax.numpy as jnp
import numpy as np
from jax.experimental import pallas as pl
from jax.experimental.pallas import tpu as pltpu

LN_EPS = 1e-5


# ---------------------------------------------------------------------------
# Tiling / VMEM planning helpers
# ---------------------------------------------------------------------------
def _round_up(x, m):
    return ((x + m - 1) // m) * m


def _vmem_capacity_bytes():
    try:
        return int(pltpu.get_tpu_info().vmem_capacity_bytes)
    except Exception:
        return 64 * 1024 * 1024  # conservative fallback (v7x physical VMEM)


def _phase2_vmem_bytes(tm, h, in_bytes, out_bytes, fused):
    w_bytes = (h * 2 * h * in_bytes) if fused else (2 * h * h * in_bytes)
    # double-buffered pipeline buffers + rough bound on elementwise/LN intermediates
    bufs = 2 * (tm * h * in_bytes + tm * h * out_bytes + w_bytes + 8 * h * 4)
    interm = 10 * tm * h * 4
    return bufs + interm


def _pick_row_tile(L, h, in_bytes, out_bytes, fused, budget):
    """Largest sublane-aligned row tile that fits the VMEM budget."""
    cap = 1024 if h <= 512 else 512
    if in_bytes >= 4 and h >= 1024:
        cap = 256  # f32 operands at large H: keep v7x's 64 MiB VMEM happy
    tm = cap
    while tm > 8 and _phase2_vmem_bytes(tm, h, in_bytes, out_bytes, fused) > budget:
        tm //= 2
    return max(8, min(tm, _round_up(L, 8)))


# ---------------------------------------------------------------------------
# Phase 1a: masked row-sum over L (tiled, accumulates in the resident out block)
# ---------------------------------------------------------------------------
def _masked_sum_kernel(x_ref, m_ref, num_ref):
    @pl.when(pl.program_id(1) == 0)
    def _():
        num_ref[...] = jnp.zeros_like(num_ref)

    x = x_ref[0]                        # [TM, H]  (matmul dtype)
    m = m_ref[0, 0].astype(x.dtype)     # [1, TM]  lane-dense (0/1 is exact in bf16)
    # Masked sum rides the MXU as a [1,TM]@[TM,H] matvec; f32 accumulation.
    num_ref[0] += jnp.dot(m, x, preferred_element_type=jnp.float32)


# ---------------------------------------------------------------------------
# Phase 1b: batched masked-mean -> global_layer -> gating_layer_global
# ---------------------------------------------------------------------------
def _global_kernel(num_ref, den_ref, wg_ref, bg_ref, wgg_ref, bgg_ref, gv_ref, gg_ref):
    # NOTE: like the PyTorch layer, a fully-masked row (den == 0) yields inf/nan.
    gv0 = num_ref[...] / den_ref[...]                                           # [B, H]
    gv = jnp.dot(gv0, wg_ref[...], preferred_element_type=jnp.float32) + bg_ref[...]
    gg = jnp.dot(gv, wgg_ref[...], preferred_element_type=jnp.float32) + bgg_ref[...]
    gv_ref[...] = gv
    gg_ref[...] = gg


# ---------------------------------------------------------------------------
# Phase 2: hot streaming row-tile kernel
# ---------------------------------------------------------------------------
def _finish_tile(_src, g_s, gv, gg, gamma, beta, out_ref):
    gate = jax.nn.sigmoid(g_s + gg)
    mixed = _src * gate + gv * (1.0 - gate)
    # mixed + relu(mixed), then LayerNorm (dropout = identity in eval mode).
    y = jnp.where(mixed > 0.0, mixed + mixed, mixed)
    mean = jnp.mean(y, axis=-1, keepdims=True)
    var = jnp.maximum(jnp.mean(y * y, axis=-1, keepdims=True) - mean * mean, 0.0)
    y_hat = (y - mean) * jax.lax.rsqrt(var + LN_EPS)
    out_ref[0] = (y_hat * gamma + beta).astype(out_ref.dtype)


def _fused_tile_kernel(h, x_ref, gv_ref, gg_ref, wc_ref, bc_ref,
                       gamma_ref, beta_ref, out_ref):
    # Single (TM,H)@(H,2H) MXU pass: y2[:, :H] = siamese(x),
    #                                y2[:, H:] = gating_siamese(siamese(x)).
    y2 = jnp.dot(x_ref[0], wc_ref[...], preferred_element_type=jnp.float32) + bc_ref[...]
    _finish_tile(y2[:, :h], y2[:, h:], gv_ref[0], gg_ref[0],
                 gamma_ref[...], beta_ref[...], out_ref)


def _unfused_tile_kernel(x_ref, gv_ref, gg_ref, ws_ref, bs_ref, wgs_ref, bgs_ref,
                         gamma_ref, beta_ref, out_ref):
    x = x_ref[0]
    wgs = wgs_ref[...]
    _src = jnp.dot(x, ws_ref[...], preferred_element_type=jnp.float32) + bs_ref[...]
    g_s = jnp.dot(_src.astype(wgs.dtype), wgs,
                  preferred_element_type=jnp.float32) + bgs_ref[...]
    _finish_tile(_src, g_s, gv_ref[0], gg_ref[0], gamma_ref[...], beta_ref[...], out_ref)


# ---------------------------------------------------------------------------
# Wrapper
# ---------------------------------------------------------------------------
def gated_dss_encoder_layer(src, src_mask, params, *,
                            matmul_dtype=jnp.float32, out_dtype=jnp.float32):
    """src: [B, L, H] f32; src_mask: [B, 1, 1, L] (attention-style)."""
    B, L, H = src.shape
    f32 = jnp.float32
    in_bytes = jnp.dtype(matmul_dtype).itemsize
    out_bytes = jnp.dtype(out_dtype).itemsize
    row = lambda v: v.reshape(1, -1).astype(f32)

    # Fold gating_siamese∘siamese into one MXU pass when the lane slice is 128-aligned.
    fused = (H % 128 == 0)

    vmem_cap = _vmem_capacity_bytes()
    TM = _pick_row_tile(L, H, in_bytes, out_bytes, fused, budget=int(0.6 * vmem_cap))
    L_pad = _round_up(L, TM)
    nt = L_pad // TM
    vmem_limit = int(min(max(2 * _phase2_vmem_bytes(TM, H, in_bytes, out_bytes, fused),
                             32 * 1024 * 1024),
                         int(0.9 * vmem_cap)))

    mask2d = src_mask.reshape(B, L).astype(f32)
    x_in = src.astype(matmul_dtype)     # single cast; phases 1a and 2 share this stream
    if L_pad != L:
        x_in = jnp.pad(x_in, ((0, 0), (0, L_pad - L), (0, 0)))
        mask_p = jnp.pad(mask2d, ((0, 0), (0, L_pad - L)))
    else:
        mask_p = mask2d
    mask4 = mask_p.reshape(B, nt, 1, TM)

    # ---- Phase 1a: masked row-sum --------------------------------------------------------
    num3 = pl.pallas_call(
        _masked_sum_kernel,
        out_shape=jax.ShapeDtypeStruct((B, 1, H), f32),
        grid_spec=pltpu.PrefetchScalarGridSpec(
            num_scalar_prefetch=0,
            grid=(B, nt),
            in_specs=[
                pl.BlockSpec((1, TM, H), lambda b, l: (b, l, 0)),
                pl.BlockSpec((1, 1, 1, TM), lambda b, l: (b, l, 0, 0)),
            ],
            out_specs=pl.BlockSpec((1, 1, H), lambda b, l: (b, 0, 0)),
        ),
        compiler_params=pltpu.CompilerParams(
            dimension_semantics=("parallel", "arbitrary"),
            vmem_limit_bytes=vmem_limit),
    )(x_in, mask4)

    # ---- Phase 1b: one batched [B,H]@[H,H]@[H,H] pass (tiny) -----------------------------
    den = jnp.sum(mask2d, axis=1, keepdims=True)            # [B, 1]  (negligible HBM)
    gv, gg = pl.pallas_call(
        _global_kernel,
        out_shape=(jax.ShapeDtypeStruct((B, H), f32),
                   jax.ShapeDtypeStruct((B, H), f32)),
    )(num3.reshape(B, H), den,
      params["wg"].astype(f32), row(params["bg"]),
      params["wgg"].astype(f32), row(params["bgg"]))
    gv3 = gv.reshape(B, 1, H)
    gg3 = gg.reshape(B, 1, H)

    # ---- Phase 2: streaming row-tile kernel ----------------------------------------------
    tile_spec = pl.BlockSpec((1, TM, H), lambda b, i: (b, i, 0))
    per_batch = pl.BlockSpec((1, 1, H), lambda b, i: (b, 0, 0))
    vec_h = pl.BlockSpec((1, H), lambda b, i: (0, 0))
    # TODO(synk): once top-level pallas_call honors pipeline_mode, mark the constant-index
    # weight/bias specs pl.Buffered(1) to drop their unused second pipeline buffer.

    if fused:
        ws, wgs = params["ws"].astype(f32), params["wgs"].astype(f32)
        bs, bgs = params["bs"].astype(f32), params["bgs"].astype(f32)
        w_comb = jnp.concatenate([ws, ws @ wgs], axis=1).astype(matmul_dtype)   # [H, 2H]
        b_comb = jnp.concatenate([bs, bs @ wgs + bgs]).reshape(1, 2 * H)         # [1, 2H]
        kernel = functools.partial(_fused_tile_kernel, H)
        w_specs = [pl.BlockSpec((H, 2 * H), lambda b, i: (0, 0)),
                   pl.BlockSpec((1, 2 * H), lambda b, i: (0, 0))]
        w_args = (w_comb, b_comb)
    else:
        kernel = _unfused_tile_kernel
        w_spec = pl.BlockSpec((H, H), lambda b, i: (0, 0))
        w_specs = [w_spec, vec_h, w_spec, vec_h]
        w_args = (params["ws"].astype(matmul_dtype), row(params["bs"]),
                  params["wgs"].astype(matmul_dtype), row(params["bgs"]))

    out = pl.pallas_call(
        kernel,
        out_shape=jax.ShapeDtypeStruct((B, L_pad, H), out_dtype),
        grid_spec=pltpu.PrefetchScalarGridSpec(
            num_scalar_prefetch=0,
            grid=(B, nt),
            in_specs=[tile_spec, per_batch, per_batch] + w_specs + [vec_h, vec_h],
            out_specs=tile_spec,
        ),
        compiler_params=pltpu.CompilerParams(
            dimension_semantics=("parallel", "parallel"),
            vmem_limit_bytes=vmem_limit),
    )(x_in, gv3, gg3, *w_args, row(params["gamma"]), row(params["beta"]))

    return out[:, :L, :] if L_pad != L else out


# ---------------------------------------------------------------------------
# Pure-JAX reference & helpers
# ---------------------------------------------------------------------------
def _reference(src, src_mask, params):
    """Pure-JAX reference mirroring the PyTorch forward (eval mode)."""
    B, L, H = src.shape
    mask = src_mask.reshape(B, L, 1).astype(src.dtype)
    _src = src @ params["ws"] + params["bs"]
    gv = jnp.sum(src * mask, axis=1) / jnp.sum(mask, axis=1)
    gv = (gv @ params["wg"] + params["bg"])[:, None, :]
    gate = jax.nn.sigmoid((_src @ params["wgs"] + params["bgs"])
                          + (gv @ params["wgg"] + params["bgg"]))
    mixed = _src * gate + gv * (1.0 - gate)
    y = mixed + jax.nn.relu(mixed)
    mean = jnp.mean(y, axis=-1, keepdims=True)
    var = jnp.mean((y - mean) ** 2, axis=-1, keepdims=True)
    y_hat = (y - mean) / jnp.sqrt(var + LN_EPS)
    return y_hat * params["gamma"] + params["beta"]


def _init_params(key, H):
    ks = jax.random.split(key, 8)
    s = 1.0 / np.sqrt(H)
    return {
        "ws":  jax.random.uniform(ks[0], (H, H), jnp.float32, -s, s),
        "bs":  jax.random.uniform(ks[1], (H,),   jnp.float32, -s, s),
        "wg":  jax.random.uniform(ks[2], (H, H), jnp.float32, -s, s),
        "bg":  jax.random.uniform(ks[3], (H,),   jnp.float32, -s, s),
        "wgs": jax.random.uniform(ks[4], (H, H), jnp.float32, -s, s),
        "bgs": jax.random.uniform(ks[5], (H,),   jnp.float32, -s, s),
        "wgg": jax.random.uniform(ks[6], (H, H), jnp.float32, -s, s),
        "bgg": jax.random.uniform(ks[7], (H,),   jnp.float32, -s, s),
        "gamma": jnp.ones((H,), jnp.float32),
        "beta":  jnp.zeros((H,), jnp.float32),
    }


def _run_case(B, L, H, key, matmul_dtype, rtol, atol):
    k_src, k_mask, k_par = jax.random.split(key, 3)
    src = jax.random.normal(k_src, (B, L, H), jnp.float32)
    mask_bits = (jax.random.uniform(k_mask, (B, L)) > 0.3).astype(jnp.float32)
    mask_bits = mask_bits.at[:, 0].set(1.0)           # at least one valid position per row
    src_mask = mask_bits.reshape(B, 1, 1, L)
    params = _init_params(k_par, H)
    ref = _reference(src, src_mask, params)
    out = jax.block_until_ready(
        gated_dss_encoder_layer(src, src_mask, params, matmul_dtype=matmul_dtype))
    np.testing.assert_allclose(np.asarray(out), np.asarray(ref), rtol=rtol, atol=atol)


if __name__ == "__main__":
    key = jax.random.PRNGKey(0)
    k1, k2, k3, k4 = jax.random.split(key, 4)

    # Small demo shape (H=32 -> unfused two-dot path; blocks equal full dims).
    # f32 tolerance is 1e-4 because the single-pass LN variance rewrite changes rounding.
    _run_case(2, 8, 32, k1, jnp.float32, 1e-4, 1e-4)
    # Lane-aligned H -> fused W_comb path (single (TM,H)@(H,2H) MXU pass).
    _run_case(2, 8, 128, k2, jnp.float32, 1e-4, 1e-4)
    # bf16 MXU operands (perf mode): f32 accumulation/LN; bf16 quantization of x/weights
    # (and the pre-folded Ws@Wgs) diverges from the f32 reference at the percent level.
    _run_case(2, 8, 128, k3, jnp.bfloat16, 5e-2, 1e-1)
    # L not a multiple of 8 -> exercises the pad-and-slice path.
    _run_case(2, 12, 32, k4, jnp.float32, 1e-4, 1e-4)

    print("KERNEL_OK")
</pallas_src>

<mosaic_0001>
module attributes {stable_mosaic.version = 11 : i64} {
  func.func @_masked_sum_kernel(%arg0: i32, %arg1: i32, %arg2: memref<1x8x32xf32, #tpu.memory_space<vmem>>, %arg3: memref<1x1x1x8xf32, #tpu.memory_space<vmem>>, %arg4: memref<1x1x32xf32, #tpu.memory_space<vmem>>) attributes {dimension_semantics = [#tpu.dimension_semantics<parallel>, #tpu.dimension_semantics<arbitrary>], iteration_bounds = array<i64: 2, 1>, scalar_prefetch = 0 : i64, scratch_operands = 0 : i64, tpu.core_type = #tpu.core_type<tc>, window_params = [{transform_indices = @transform_0, window_bounds = array<i64: 1, 8, 32>}, {transform_indices = @transform_1, window_bounds = array<i64: 1, 1, 1, 8>}, {transform_indices = @transform_2, window_bounds = array<i64: 1, 1, 32>}]} {
    %c0_i32 = arith.constant 0 : i32
    %0 = arith.cmpi eq, %arg1, %c0_i32 : i32
    %1 = arith.extui %0 : i1 to i32
    %c0_i32_0 = arith.constant 0 : i32
    %2 = arith.cmpi ne, %1, %c0_i32_0 : i32
    scf.if %2 {
      %cst_13 = arith.constant 0.000000e+00 : f32
      %14 = vector.broadcast %cst_13 : f32 to vector<1x1x32xf32>
      %c0_14 = arith.constant 0 : index
      %c0_15 = arith.constant 0 : index
      %c0_16 = arith.constant 0 : index
      %15 = vector.load %arg4[%c0_14, %c0_15, %c0_16] : memref<1x1x32xf32, #tpu.memory_space<vmem>>, vector<1x1x32xf32>
      tpu.vector_store %arg4[%c0_14, %c0_15, %c0_16], %14 {strides = array<i32>} : memref<1x1x32xf32, #tpu.memory_space<vmem>>, vector<1x1x32xf32>,
    } else {
    }
    %c0 = arith.constant 0 : index
    %c0_1 = arith.constant 0 : index
    %c0_2 = arith.constant 0 : index
    %3 = vector.load %arg2[%c0, %c0_1, %c0_2] : memref<1x8x32xf32, #tpu.memory_space<vmem>>, vector<1x8x32xf32>
    %4 = vector.shape_cast %3 : vector<1x8x32xf32> to vector<8x32xf32>
    %c0_3 = arith.constant 0 : index
    %c0_4 = arith.constant 0 : index
    %c0_5 = arith.constant 0 : index
    %c0_6 = arith.constant 0 : index
    %5 = vector.load %arg3[%c0_3, %c0_4, %c0_5, %c0_6] : memref<1x1x1x8xf32, #tpu.memory_space<vmem>>, vector<1x1x1x8xf32>
    %6 = vector.shape_cast %5 : vector<1x1x1x8xf32> to vector<1x8xf32>
    %c0_7 = arith.constant 0 : index
    %c0_8 = arith.constant 0 : index
    %c0_9 = arith.constant 0 : index
    %7 = vector.load %arg4[%c0_7, %c0_8, %c0_9] : memref<1x1x32xf32, #tpu.memory_space<vmem>>, vector<1x1x32xf32>
    %8 = vector.shape_cast %7 : vector<1x1x32xf32> to vector<1x32xf32>
    %cst = arith.constant dense<0.000000e+00> : vector<1x32xf32>
    %9 = tpu.matmul %6, %4, %cst {dimension_numbers = #tpu.dot_dimension_numbers<[1], [0], [0], [1], [0, 0, 1, 1], [], []>} : vector<1x8xf32>, vector<8x32xf32>, vector<1x32xf32> -> vector<1x32xf32>
    %10 = arith.addf %8, %9 : vector<1x32xf32>
    %c0_10 = arith.constant 0 : index
    %c0_11 = arith.constant 0 : index
    %c0_12 = arith.constant 0 : index
    %11 = vector.load %arg4[%c0_10, %c0_11, %c0_12] : memref<1x1x32xf32, #tpu.memory_space<vmem>>, vector<1x1x32xf32>
    %12 = vector.shape_cast %11 : vector<1x1x32xf32> to vector<1x32xf32>
    %13 = vector.shape_cast %10 : vector<1x32xf32> to vector<1x1x32xf32>
    tpu.vector_store %arg4[%c0_10, %c0_11, %c0_12], %13 {strides = array<i32>} : memref<1x1x32xf32, #tpu.memory_space<vmem>>, vector<1x1x32xf32>,
    return
  }
  func.func @transform_0(%arg0: i32, %arg1: i32) -> (i32, i32, i32) {
    %c0_i32 = arith.constant 0 : i32
    %c0_i32_0 = arith.constant 0 : i32
    return %arg0, %arg1, %c0_i32 : i32, i32, i32
  }
  func.func @transform_1(%arg0: i32, %arg1: i32) -> (i32, i32, i32, i32) {
    %c0_i32 = arith.constant 0 : i32
    %c0_i32_0 = arith.constant 0 : i32
    %c0_i32_1 = arith.constant 0 : i32
    return %arg0, %arg1, %c0_i32, %c0_i32_0 : i32, i32, i32, i32
  }
  func.func @transform_2(%arg0: i32, %arg1: i32) -> (i32, i32, i32) {
    %c0_i32 = arith.constant 0 : i32
    %c0_i32_0 = arith.constant 0 : i32
    %c0_i32_1 = arith.constant 0 : i32
    return %arg0, %c0_i32, %c0_i32_0 : i32, i32, i32
  }
}

</mosaic_0001>

<llo_original>
// kernel: tpu_custom_call.1
$region0: #{tpu_custom_call.1}
  #allocation0 [shape = 'u32[]', space=smem, size = 0x4, offset = 0x4, fixed_abs, tag = 'smem constant byte address 0x4 - core index']
  #allocation1 [shape = 'u32[72,128]{1,0:T(1,128)}', space=vmem, size = 0x9000, scoped, tag = 'internal scratch']
  %s0 = inlined_call_operand.hbm [shape: f32[2,8,32], index: 0, kind: input, shape index: {}]
  %s1 = inlined_call_operand.hbm [shape: f32[2,1,1,8], index: 1, kind: input, shape index: {}]
  %s2 = inlined_call_operand.hbm [shape: f32[2,1,32], index: 2, kind: output, shape index: {}]
  %s3 = sld [smem:[#allocation0]]
  $region53: #{tpu_custom_call.1} parent=0
    _
  %s5 = ssub.s32 1, %s3
  %s6 = scalar_select 0, %s5, %s3
  $region1: #{tpu_custom_call.1} parent=0
    #allocation2 [shape = 'u8[8192]{0}', space=vmem, size = 0x2000, scoped, tag = 'input window, operand 0']
    #allocation3 [shape = 's32[2]{0}', space=sflag, size = 0x8, scoped, tag = 'scoped memory for tpu_custom_call.1']
    #allocation4 [shape = 's32[2]{0}', space=sflag, size = 0x8, scoped, tag = 'scoped memory for tpu_custom_call.1']
    #allocation5 [shape = 'u8[1024]{0}', space=vmem, size = 0x400, scoped, tag = 'input window, operand 1']
    #allocation6 [shape = 's32[2]{0}', space=sflag, size = 0x8, scoped, tag = 'scoped memory for tpu_custom_call.1']
    #allocation7 [shape = 'u8[1024]{0}', space=vmem, size = 0x400, scoped, tag = 'output window, operand 0']
    %7 = vsyncpa [#allocation3], 0
    %s8 = scalar_lea.sflag [#allocation3], 1
    %9 = vsyncpa %s8, 0
    %10 = vsyncpa [#allocation6], 0
    %s11 = scalar_lea.sflag [#allocation6], 1
    %12 = vsyncpa %s11, 0
    %13 = vsyncpa [#allocation4], 0
    %s14 = scalar_lea.sflag [#allocation4], 1
    %15 = vsyncpa %s14, 0
    loop: start=0, step=1, limit=4
    $region2: #{tpu_custom_call.1} parent=1 // loop_pre_header
      _
    $region3: #{tpu_custom_call.1} parent=1 // loop_header
      %s17 = sphi 0, %s21
      %p18 = scmp.ge.s32.totalorder %s17, 4
      %s24 = sphi 0, %s36
      %s25 = sphi 0, %s32
      %s26 = sphi 0, %s24
      %s27 = sphi 0, %s25
      %s28 = sphi 0, %s26
      %s29 = sphi 0, %s27
      %s41 = sphi 0, %s43
      %s44 = sphi 0, %s41
      %s45 = sphi 0, %s44
      %s61 = sphi 0, %s45
      %s69 = sphi 0, %s71
      %s72 = sphi 0, %s69
      %s73 = sphi 0, %s72
      %s89 = sphi 0, %s73
      %s95 = sphi 0, %s97
      %s98 = sphi 0, %s95
      %s99 = sphi 0, %s98
      %s115 = sphi 0, %s99
    $region4: #{tpu_custom_call.1} parent=1 // loop_header_branch
      %20 = sbr.rel (%p18) target = $region8
    $region5: #{tpu_custom_call.1} parent=1 // loop_body
      %s22 = ssub.s32 %s17, 1
      %s23 = ssub.s32 %s17, 2
      %s30 = sadd.s32 1, %s25
      %p31 = scmp.ge.s32.totalorder %s30, 1
      %s32 = scalar_select %p31, 0, %s30
      %s33 = sadd.s32 1, %s24
      %s34 = scalar_select %p31, %s33, %s24
      %p35 = scmp.ge.s32.totalorder %s34, 2
      %s36 = scalar_select %p35, 0, %s34
      %s37 = ssub.s32 %s24, %s36
      %s38 = ssub.s32 %s25, %s32
      %s39 = sor.u32 %s37, %s38
      %p40 = scmp.eq.s32.totalorder %s39, 0
      %s42 = sadd.s32 %s41, 1
      %s43 = scalar_select %p40, %s41, %s42
      %p46 = pneg %p40
      %p47 = scmp.eq.s32.totalorder %s17, 1
      %p48 = por %p46, %p47
      %p49 = scmp.ne.s32.totalorder %s41, %s44
      %p50 = scmp.eq.s32.totalorder %s17, 0
      %p51 = por %p49, %p50
      %p52 = scmp.ne.s32.totalorder %s41, %s44
      %p53 = scmp.eq.s32.totalorder %s22, 1
      %p54 = por %p52, %p53
      %p55 = scmp.ne.s32.totalorder %s44, %s45
      %p56 = scmp.eq.s32.totalorder %s22, 0
      %p57 = por %p55, %p56
      %p58 = scmp.ne.s32.totalorder %s44, %s45
      %p59 = scmp.eq.s32.totalorder %s23, 1
      %p60 = por %p58, %p59
      %p62 = scmp.ne.s32.totalorder %s45, %s61
      %p63 = scmp.eq.s32.totalorder %s23, 0
      %p64 = por %p62, %p63
      %s65 = ssub.s32 %s24, %s36
      %s66 = ssub.s32 %s25, %s32
      %s67 = sor.u32 %s65, %s66
      %p68 = scmp.eq.s32.totalorder %s67, 0
      %s70 = sadd.s32 %s69, 1
      %s71 = scalar_select %p68, %s69, %s70
      %p74 = pneg %p68
      %p75 = scmp.eq.s32.totalorder %s17, 1
      %p76 = por %p74, %p75
      %p77 = scmp.ne.s32.totalorder %s69, %s72
      %p78 = scmp.eq.s32.totalorder %s17, 0
      %p79 = por %p77, %p78
      %p80 = scmp.ne.s32.totalorder %s69, %s72
      %p81 = scmp.eq.s32.totalorder %s22, 1
      %p82 = por %p80, %p81
      %p83 = scmp.ne.s32.totalorder %s72, %s73
      %p84 = scmp.eq.s32.totalorder %s22, 0
      %p85 = por %p83, %p84
      %p86 = scmp.ne.s32.totalorder %s72, %s73
      %p87 = scmp.eq.s32.totalorder %s23, 1
      %p88 = por %p86, %p87
      %p90 = scmp.ne.s32.totalorder %s73, %s89
      %p91 = scmp.eq.s32.totalorder %s23, 0
      %p92 = por %p90, %p91
      %s93 = ssub.s32 %s24, %s36
      %p94 = scmp.eq.s32.totalorder %s93, 0
      %s96 = sadd.s32 %s95, 1
      %s97 = scalar_select %p94, %s95, %s96
      %p100 = pneg %p94
      %p101 = scmp.eq.s32.totalorder %s17, 1
      %p102 = por %p100, %p101
      %p103 = scmp.ne.s32.totalorder %s95, %s98
      %p104 = scmp.eq.s32.totalorder %s17, 0
      %p105 = por %p103, %p104
      %p106 = scmp.ne.s32.totalorder %s95, %s98
      %p107 = scmp.eq.s32.totalorder %s22, 1
      %p108 = por %p106, %p107
      %p109 = scmp.ne.s32.totalorder %s98, %s99
      %p110 = scmp.eq.s32.totalorder %s22, 0
      %p111 = por %p109, %p110
      %p112 = scmp.ne.s32.totalorder %s98, %s99
      %p113 = scmp.eq.s32.totalorder %s23, 1
      %p114 = por %p112, %p113
      %p116 = scmp.ne.s32.totalorder %s99, %s115
      %p117 = scmp.eq.s32.totalorder %s23, 0
      %p118 = por %p116, %p117
      %p119 = scmp.le.s32.totalorder 1, %s17
      %p120 = scmp.lt.s32.totalorder %s17, 3
      %p121 = pnand %p119, %p120
      %p122 = pneg %p121
      // Predicated region
      $region9: #{tpu_custom_call.1} parent=5 // pred_check
        _
      $region10: #{tpu_custom_call.1} parent=5 // pred_check_branch
        %124 = sbr.rel (%p121) target = $region12
      $region11: #{tpu_custom_call.1} parent=5 // pred_region
        %s125 = ssub.s32 %s17, 1
      $region12: #{tpu_custom_call.1} parent=5 // pred_fallthru
        _
      %p126 = scmp.lt.s32.totalorder %s17, 2
      // Predicated region
      $region13: #{tpu_custom_call.1} parent=5 // pred_check
        %p127 = pneg %p126
      $region14: #{tpu_custom_call.1} parent=5 // pred_check_branch
        %129 = sbr.rel (%p127) target = $region16
      $region15: #{tpu_custom_call.1} parent=5 // pred_region
        // Predicated region
        $region17: #{tpu_custom_call.1} parent=15 // pred_check
          %p130 = pneg %p51
        $region18: #{tpu_custom_call.1} parent=15 // pred_check_branch
          %132 = sbr.rel (%p130) target = $region20
        $region19: #{tpu_custom_call.1} parent=15 // pred_region
          %s133 = sand.u32 %s41, 1
          %s134 = scalar_lea.sflag [#allocation3], %s133
          %s135 = sand.u32 %s41, 1
          %s136 = smul.addr %s135, 8
          %s137 = scalar_lea.vmem [#allocation2], %s136
          %139 = vsyncadd %s134, 0
          %s140 = sadd.s32 %s25, %s24
          %s141 = smul.addr %s140, 8
          %s142 = scalar_lea.hbm %s0, %s141
          %s144 = sshll.u32 %s142, 4
          %s145 = int_to_ptr.hbm [resolvable:$true] %s144
          %s146 = sshll.u32 %s137, 4
          %s147 = int_to_ptr.vmem [resolvable:$true] %s146
          %149 = dma.hbm_to_vmem [thread:$0]  %s145, 128, %s147, %s134
        $region20: #{tpu_custom_call.1} parent=15 // pred_fallthru
          _
        // Predicated region
        $region21: #{tpu_custom_call.1} parent=15 // pred_check
          %p150 = pneg %p79
        $region22: #{tpu_custom_call.1} parent=15 // pred_check_branch
          %152 = sbr.rel (%p150) target = $region24
        $region23: #{tpu_custom_call.1} parent=15 // pred_region
          %s153 = sand.u32 %s69, 1
          %s154 = scalar_lea.sflag [#allocation6], %s153
          %s155 = sand.u32 %s69, 1
          %s156 = scalar_lea.vmem [#allocation5], %s155
          %158 = vsyncadd %s154, 0
          %s159 = sadd.s32 %s25, %s24
          %s160 = scalar_lea.hbm %s1, %s159
          %s162 = sshll.u32 %s160, 4
          %s163 = int_to_ptr.hbm [resolvable:$true] %s162
          %s164 = sshll.u32 %s156, 4
          %s165 = int_to_ptr.vmem [resolvable:$true] %s164
          %167 = dma.hbm_to_vmem [thread:$0]  %s163, 16, %s165, %s154
        $region24: #{tpu_custom_call.1} parent=15 // pred_fallthru
          _
      $region16: #{tpu_custom_call.1} parent=5 // pred_fallthru
        _
      %p168 = scmp.le.s32.totalorder 1, %s17
      %p169 = scmp.lt.s32.totalorder %s17, 3
      %p170 = pnand %p168, %p169
      %p171 = pneg %p170
      // Predicated region
      $region25: #{tpu_custom_call.1} parent=5 // pred_check
        _
      $region26: #{tpu_custom_call.1} parent=5 // pred_check_branch
        %173 = sbr.rel (%p170) target = $region28
      $region27: #{tpu_custom_call.1} parent=5 // pred_region
        %s174 = ssub.s32 %s17, 1
        %s175 = sand.u32 %s44, 1
        %s176 = scalar_lea.sflag [#allocation3], %s175
        %s177 = sand.u32 %s44, 1
        %s178 = smul.addr %s177, 8
        %s179 = scalar_lea.vmem [#allocation2], %s178
        // Predicated region
        $region29: #{tpu_custom_call.1} parent=27 // pred_check
          %p180 = pneg %p57
        $region30: #{tpu_custom_call.1} parent=27 // pred_check_branch
          %182 = sbr.rel (%p180) target = $region32
        $region31: #{tpu_custom_call.1} parent=27 // pred_region
          %184 = dma.done %s176, 128
        $region32: #{tpu_custom_call.1} parent=27 // pred_fallthru
          _
        %s185 = sand.u32 %s72, 1
        %s186 = scalar_lea.sflag [#allocation6], %s185
        %s187 = sand.u32 %s72, 1
        %s188 = scalar_lea.vmem [#allocation5], %s187
        // Predicated region
        $region33: #{tpu_custom_call.1} parent=27 // pred_check
          %p189 = pneg %p85
        $region34: #{tpu_custom_call.1} parent=27 // pred_check_branch
          %191 = sbr.rel (%p189) target = $region36
        $region35: #{tpu_custom_call.1} parent=27 // pred_region
          %193 = dma.done %s186, 16
        $region36: #{tpu_custom_call.1} parent=27 // pred_fallthru
          _
        %s194 = sand.u32 %s44, 1
        %s195 = scalar_lea.sflag [#allocation3], %s194
        %s196 = sand.u32 %s44, 1
        %s197 = smul.addr %s196, 8
        %s198 = scalar_lea.vmem [#allocation2], %s197
        %p199 = pneg %p57
        %p200 = pneg %p54
        %s201 = sand.u32 %s72, 1
        %s202 = scalar_lea.sflag [#allocation6], %s201
        %s203 = sand.u32 %s72, 1
        %s204 = scalar_lea.vmem [#allocation5], %s203
        %p205 = pneg %p85
        %p206 = pneg %p82
        %p207 = pneg %p111
        %p208 = pneg %p108
        %s209 = sand.u32 %s98, 1
        %s210 = scalar_lea.sflag [#allocation4], %s209
        %s211 = sand.u32 %s98, 1
        %s212 = scalar_lea.vmem [#allocation7], %s211
        %p213 = scmp.eq.s32.totalorder %s27, 0
        // Predicated region
        $region37: #{tpu_custom_call.1} parent=27 // pred_check
          %p214 = pneg %p213
        $region38: #{tpu_custom_call.1} parent=27 // pred_check_branch
          %216 = sbr.rel (%p214) target = $region40
        $region39: #{tpu_custom_call.1} parent=27 // pred_region
          %vm217 = vcmask 253952
          %218 = vst.msk [vmem:[%s212] sm:$0x1] %vm217, 0.0
        $region40: #{tpu_custom_call.1} parent=27 // pred_fallthru
          _
        %v219 = vld [vmem:[%s179] sm:$0xff]
        %v220 = vld [vmem:[%s188] sm:$0x1]
        %v221 = vld [vmem:[%s212] sm:$0x1]
        %vm222 = vcmask 64512
        %v224 = vsel %vm222, %v220, 0
        %226 = vmatpush.msra.mxu0 0.0
        %227 = vmatpush.msra.mxu0 0.0
        %228 = vmatpush.msra.mxu0 0.0
        %229 = vmatpush.msra.mxu0 0.0
        %230 = vmatpush.msra.mxu0 0.0
        %231 = vmatpush.msra.mxu0 0.0
        %232 = vmatpush.msra.mxu0 0.0
        %233 = vmatpush.msra.mxu0 0.0
        %234 = vmatpush.msra.mxu0 0.0
        %235 = vmatpush.msra.mxu0 0.0
        %236 = vmatpush.msra.mxu0 0.0
        %237 = vmatpush.msra.mxu0 0.0
        %238 = vmatpush.msra.mxu0 0.0
        %239 = vmatpush.msra.mxu0 0.0
        %240 = vmatpush.msra.mxu0 0.0
        %241 = vmatpush.msra.mxu0 %v219
        %242 = vmatmul.f32.gmra.mxu0 %v224
        %v243 = vpop.f32.mrf.mxu0
        %v244 = vadd.f32 0.0, %v243
        %245 = vdwg.mxu0
        %v246 = vadd.f32 %v221, %v244
        %vm247 = vcmask 253952
        %248 = vst.msk [vmem:[%s212] sm:$0x1] %vm247, %v246
        %s249 = sand.u32 %s98, 1
        %s250 = scalar_lea.sflag [#allocation4], %s249
        %s251 = sand.u32 %s98, 1
        %s252 = scalar_lea.vmem [#allocation7], %s251
        // Predicated region
        $region41: #{tpu_custom_call.1} parent=27 // pred_check
          %p253 = pneg %p108
        $region42: #{tpu_custom_call.1} parent=27 // pred_check_branch
          %255 = sbr.rel (%p253) target = $region44
        $region43: #{tpu_custom_call.1} parent=27 // pred_region
          %257 = vsyncadd %s250, 0
          %s258 = scalar_lea.hbm %s2, %s26
          %s260 = sshll.u32 %s252, 4
          %s261 = int_to_ptr.vmem [resolvable:$true] %s260
          %s262 = sshll.u32 %s258, 4
          %s263 = int_to_ptr.hbm [resolvable:$true] %s262
          %265 = dma.vmem_to_hbm [thread:$0]  %s261, 16, %s263, %s250
        $region44: #{tpu_custom_call.1} parent=27 // pred_fallthru
          _
      $region28: #{tpu_custom_call.1} parent=5 // pred_fallthru
        _
      %p266 = scmp.le.s32.totalorder 2, %s17
      // Predicated region
      $region45: #{tpu_custom_call.1} parent=5 // pred_check
        %p267 = pneg %p266
      $region46: #{tpu_custom_call.1} parent=5 // pred_check_branch
        %269 = sbr.rel (%p267) target = $region48
      $region47: #{tpu_custom_call.1} parent=5 // pred_region
        %s270 = ssub.s32 %s17, 2
        // Predicated region
        $region49: #{tpu_custom_call.1} parent=47 // pred_check
          %p271 = pneg %p114
        $region50: #{tpu_custom_call.1} parent=47 // pred_check_branch
          %273 = sbr.rel (%p271) target = $region52
        $region51: #{tpu_custom_call.1} parent=47 // pred_region
          %s274 = sand.u32 %s99, 1
          %s275 = scalar_lea.sflag [#allocation4], %s274
          %s276 = sand.u32 %s99, 1
          %s277 = scalar_lea.vmem [#allocation7], %s276
          %279 = dma.done %s275, 16
        $region52: #{tpu_custom_call.1} parent=47 // pred_fallthru
          _
      $region48: #{tpu_custom_call.1} parent=5 // pred_fallthru
        _
    $region6: #{tpu_custom_call.1} parent=1 // loop_footer
      %s21 = sadd.s32 1, %s17
    $region7: #{tpu_custom_call.1} parent=1 // loop_footer_branch
      %16 = sbr.rel target = $region3
    $region8: #{tpu_custom_call.1} parent=1 // loop_exit
      _
    %280 = vsyncpa [#allocation3], 1
    %s281 = scalar_lea.sflag [#allocation3], 1
    %282 = vsyncpa %s281, 1
    %283 = vsyncpa [#allocation6], 1
    %s284 = scalar_lea.sflag [#allocation6], 1
    %285 = vsyncpa %s284, 1
    %286 = vsyncpa [#allocation4], 1
    %s287 = scalar_lea.sflag [#allocation4], 1
    %288 = vsyncpa %s287, 1

</llo_original>
